<compile_context>
chip_gen: v5e
topology: v5e:2x2
jax: 0.10.0
libtpu: 0.0.40
codegen_flags: <defaults>
</compile_context>

<pallas_src>
import functools

import jax
import jax.numpy as jnp
from jax import lax
from jax.experimental import pallas as pl
from jax.experimental.pallas import tpu as pltpu

ALPHA = 1.0          # scalar alpha (module default)
GAMMA = 2.0
IGNORE_INDEX = -100


def _focal_loss_kernel(logits_ref, targets_ref, out_ref, *,
                       alpha, gamma, ignore_index, batch, block_rows):
    # logits_ref: (TB, C) input dtype, targets_ref: (TB, 1) int32,
    # out_ref:    (8, 128) f32 partial-sum tile for this block.
    i = pl.program_id(0)
    logits = logits_ref[...]                                  # native dtype (f32/bf16)
    tgt = targets_ref[...]                                    # (TB, 1) int32
    TB, C = logits.shape

    # Valid row = inside the real batch (last tile may read padding) AND not ignored.
    row_idx = i * block_rows + lax.broadcasted_iota(jnp.int32, (TB, 1), 0)
    valid = jnp.logical_and(row_idx < batch, tgt != ignore_index)

    # One (1, C) class-index row broadcast against (TB, 1) targets: no full
    # (TB, C) int32 iota materialized per step.
    cls_row = lax.broadcasted_iota(jnp.int32, (1, C), 1)
    onehot = cls_row == tgt                                   # (TB, C) via broadcast

    # Numerically stable LSE. Elementwise pass stays in the input dtype (bf16
    # VALU on v6e/v7x); only the exp operand and (TB, 1) rows go to f32.
    row_max = jnp.max(logits, axis=-1, keepdims=True)         # (TB, 1), exact
    shifted = logits - row_max
    sumexp = jnp.sum(jnp.exp(shifted.astype(jnp.float32)),
                     axis=-1, keepdims=True)                  # (TB, 1) f32
    # Gather target logit from the *raw* tile so this XLU reduce overlaps the
    # max/subtract/exp chain instead of depending on it.
    tgt_logit = jnp.sum(jnp.where(onehot, logits, 0),
                        axis=-1, keepdims=True).astype(jnp.float32)   # (TB, 1)

    # Clamp ce >= 0: rounding can give lse < target logit -> p_t > 1 -> negative
    # pow base (NaN hazard). Invalid/padded rows contribute exactly 0.
    lse = jnp.log(sumexp) + row_max.astype(jnp.float32)
    ce = jnp.where(valid, jnp.maximum(lse - tgt_logit, 0.0), 0.0)

    p_t = jnp.exp(-ce)
    one_m_pt = jnp.maximum(1.0 - p_t, 0.0)
    if float(gamma) == 2.0:
        w = one_m_pt * one_m_pt                # single VPU mul, no EUP pow
    elif float(gamma).is_integer() and 0.0 < float(gamma) <= 8.0:
        w = one_m_pt
        for _ in range(int(gamma) - 1):
            w = w * one_m_pt
    else:
        w = one_m_pt ** jnp.float32(gamma)     # general gamma (base clamped >= 0)
    focal = (alpha * w) * ce                   # (TB, 1) f32

    # Lane-dense unmasked (8, 128) store: block sum broadcast to the whole tile,
    # wrapper divides by 1024 (exact power of two). No per-step mask iotas.
    out_ref[...] = jnp.full((8, 128), jnp.sum(focal), dtype=jnp.float32)


def _round_up(x, m):
    return -(-x // m) * m


def focal_loss(logits, targets, *, alpha=ALPHA, gamma=GAMMA,
               ignore_index=IGNORE_INDEX, reduction="mean", block_rows=None):
    """logits: [B, C] float (f32/bf16), targets: [B] int. Returns scalar f32 loss."""
    if reduction not in ("mean", "sum"):
        # TODO(synk): reduction='none' (per-row focal output) is not wired up.
        raise NotImplementedError(f"reduction={reduction!r} not supported")
    if isinstance(alpha, (list, tuple)):
        # TODO(synk): per-class alpha gather (extra (1, C) VMEM input selected
        # with the same one-hot) is not wired up.
        raise NotImplementedError("per-class alpha list not supported")

    B, C = logits.shape
    itemsize = jnp.dtype(logits.dtype).itemsize

    # Physical VMEM budget (~70% of per-core capacity): ~44 MiB on v7x,
    # ~90 MiB on v5e/v6e. Never request more than exists.
    try:
        vmem_cap = int(getattr(pltpu.get_tpu_info(), "vmem_capacity_bytes",
                               64 << 20))
    except Exception:
        vmem_cap = 64 << 20                       # conservative fallback (v7x)
    vmem_budget = int(vmem_cap * 0.7)

    # Per-row VMEM estimate: double-buffered inputs + ~6 full-tile f32 temps.
    headroom = 4 << 20
    per_row_bytes = 2 * (C * itemsize + 4) + 6 * C * 4
    fit_rows = max(8, (max(0, vmem_budget - headroom) // per_row_bytes) // 8 * 8)

    if block_rows is None:
        # ~10 MiB f32 working set per step (amortizes ~0.35us/step overhead on
        # v7x; well inside 128 MiB parts).
        block_rows = max(8, (10 << 20) // (C * 4))
        block_rows = min(block_rows, 2048)
        # Megacore: keep >= 2 grid blocks whenever the batch allows it.
        if B > 8:
            block_rows = min(block_rows, _round_up(_round_up(B, 2) // 2, 8))
    block_rows = min(int(block_rows), fit_rows)
    if block_rows >= B:
        block_rows = B                                  # single full block
    else:
        block_rows = max(8, (block_rows // 8) * 8)      # (8,128) sublane rule
    n_blocks = pl.cdiv(B, block_rows)

    targets_2d = targets.reshape(B, 1).astype(jnp.int32)

    kernel = functools.partial(
        _focal_loss_kernel,
        alpha=float(alpha), gamma=float(gamma),
        ignore_index=int(ignore_index), batch=B, block_rows=block_rows)

    in_tile = block_rows * (C * itemsize + 4)           # DMA tile (input dtype)
    f32_tile = block_rows * C * 4                       # in-kernel f32 working tile
    vmem_limit = max(16 << 20,
                     min(vmem_budget, 2 * in_tile + 6 * f32_tile + headroom))

    partial = pl.pallas_call(
        kernel,
        out_shape=jax.ShapeDtypeStruct((n_blocks * 8, 128), jnp.float32),
        grid=(n_blocks,),
        in_specs=[
            pl.BlockSpec((block_rows, C), lambda i: (i, 0)),   # logits tile
            pl.BlockSpec((block_rows, 1), lambda i: (i, 0)),   # targets column
        ],
        out_specs=pl.BlockSpec((8, 128), lambda i: (i, 0)),     # per-block partials
        compiler_params=pltpu.CompilerParams(
            dimension_semantics=("parallel",),                  # megacore split
            vmem_limit_bytes=int(vmem_limit)),
        cost_estimate=pl.CostEstimate(
            flops=6 * B * C,
            transcendentals=B * C + 2 * B,
            bytes_accessed=B * C * itemsize + B * 4 + n_blocks * 8 * 128 * 4),
    )(logits, targets_2d)

    # Each block wrote its sum to all 1024 lanes -> divide by 1024 (exact).
    total = jnp.sum(partial) * jnp.float32(1.0 / 1024.0)
    if reduction == "sum":
        return total
    # 'mean': over ALL batch elements (incl. ignored zeros) == torch focal.mean().
    return total / jnp.float32(B)
    # TODO(synk): for very large C (f32 row strip > v7x VMEM), add a class grid
    # axis with an online LSE (running max/sum scratch) instead of a full row strip.


def _reference_focal_loss(logits, targets, alpha=ALPHA, gamma=GAMMA,
                          ignore_index=IGNORE_INDEX, reduction="mean"):
    """Pure-JAX reference mirroring torch F.cross_entropy + focal weighting."""
    logp = jax.nn.log_softmax(logits.astype(jnp.float32), axis=-1)
    valid = targets != ignore_index
    safe_t = jnp.where(valid, targets, 0)
    ce = -jnp.take_along_axis(logp, safe_t[:, None], axis=-1)[:, 0]
    ce = jnp.where(valid, ce, 0.0)
    p_t = jnp.exp(-ce)
    focal = alpha * (1.0 - p_t) ** gamma * ce
    return focal.sum() if reduction == "sum" else focal.mean()


if __name__ == "__main__":
    key = jax.random.PRNGKey(0)
    k1, k2, k3, k4, k5, k6 = jax.random.split(key, 6)

    # Case 1: small shape, single full-array block (grid=(1,)).
    B1, C1 = 8, 32
    logits1 = jax.random.normal(k1, (B1, C1), dtype=jnp.float32)
    targets1 = jax.random.randint(k2, (B1,), 0, C1, dtype=jnp.int32)
    targets1 = targets1.at[3].set(IGNORE_INDEX)        # exercise ignore_index
    loss1 = jax.block_until_ready(focal_loss(logits1, targets1))
    ref1 = jax.block_until_ready(_reference_focal_loss(logits1, targets1))
    assert jnp.allclose(loss1, ref1, rtol=1e-5, atol=1e-6), (loss1, ref1)

    # Case 2: explicit batch tiling with a ragged last block (padding masked).
    B2, C2 = 20, 128
    logits2 = jax.random.normal(k3, (B2, C2), dtype=jnp.float32)
    targets2 = jax.random.randint(k4, (B2,), 0, C2, dtype=jnp.int32)
    targets2 = targets2.at[5].set(IGNORE_INDEX)
    loss2 = jax.block_until_ready(focal_loss(logits2, targets2, block_rows=8))
    ref2 = jax.block_until_ready(_reference_focal_loss(logits2, targets2))
    assert jnp.allclose(loss2, ref2, rtol=1e-5, atol=1e-6), (loss2, ref2)

    # Case 3: bf16 logits stay bf16 on the HBM->VMEM DMA and through the
    # elementwise pass; only exp operand / row quantities widen to f32.
    logits3 = logits2.astype(jnp.bfloat16)
    loss3 = jax.block_until_ready(focal_loss(logits3, targets2, block_rows=8))
    ref3 = jax.block_until_ready(
        _reference_focal_loss(logits3.astype(jnp.float32), targets2))
    assert jnp.allclose(loss3, ref3, rtol=2e-2, atol=2e-2), (loss3, ref3)

    # Case 4: auto block_rows path -> forced >= 2 blocks for megacore, plus
    # reduction='sum'.
    B4, C4 = 48, 160
    logits4 = jax.random.normal(k5, (B4, C4), dtype=jnp.float32)
    targets4 = jax.random.randint(k6, (B4,), 0, C4, dtype=jnp.int32)
    targets4 = targets4.at[0].set(IGNORE_INDEX)
    loss4m = jax.block_until_ready(focal_loss(logits4, targets4))
    loss4s = jax.block_until_ready(focal_loss(logits4, targets4, reduction="sum"))
    ref4m = jax.block_until_ready(_reference_focal_loss(logits4, targets4))
    ref4s = jax.block_until_ready(
        _reference_focal_loss(logits4, targets4, reduction="sum"))
    assert jnp.allclose(loss4m, ref4m, rtol=1e-5, atol=1e-6), (loss4m, ref4m)
    assert jnp.allclose(loss4s, ref4s, rtol=1e-5, atol=1e-5), (loss4s, ref4s)

    print("KERNEL_OK")
</pallas_src>

<mosaic_0001>
module attributes {stable_mosaic.version = 11 : i64} {
  func.func @_focal_loss_kernel(%arg0: i32, %arg1: memref<8x32xf32, #tpu.memory_space<vmem>>, %arg2: memref<8x1xi32, #tpu.memory_space<vmem>>, %arg3: memref<8x128xf32, #tpu.memory_space<vmem>>) attributes {dimension_semantics = [#tpu.dimension_semantics<parallel>], iteration_bounds = array<i64: 1>, scalar_prefetch = 0 : i64, scratch_operands = 0 : i64, tpu.core_type = #tpu.core_type<tc>, window_params = [{transform_indices = @transform_0, window_bounds = array<i64: 8, 32>}, {transform_indices = @transform_1, window_bounds = array<i64: 8, 1>}, {transform_indices = @transform_2, window_bounds = array<i64: 8, 128>}]} {
    %c0 = arith.constant 0 : index
    %c0_0 = arith.constant 0 : index
    %0 = vector.load %arg1[%c0, %c0_0] : memref<8x32xf32, #tpu.memory_space<vmem>>, vector<8x32xf32>
    %c0_1 = arith.constant 0 : index
    %c0_2 = arith.constant 0 : index
    %1 = vector.load %arg2[%c0_1, %c0_2] : memref<8x1xi32, #tpu.memory_space<vmem>>, vector<8x1xi32>
    %c8_i32 = arith.constant 8 : i32
    %2 = arith.muli %arg0, %c8_i32 : i32
    %3 = tpu.iota {dimensions = array<i32: 0>} : vector<8x1xi32>
    %4 = vector.broadcast %2 : i32 to vector<8x1xi32>
    %5 = arith.addi %4, %3 : vector<8x1xi32>
    %c8_i32_3 = arith.constant 8 : i32
    %6 = vector.broadcast %c8_i32_3 : i32 to vector<8x1xi32>
    %7 = arith.cmpi slt, %5, %6 : vector<8x1xi32>
    %c-100_i32 = arith.constant -100 : i32
    %8 = vector.broadcast %c-100_i32 : i32 to vector<8x1xi32>
    %9 = arith.cmpi ne, %1, %8 : vector<8x1xi32>
    %10 = arith.andi %7, %9 : vector<8x1xi1>
    %11 = tpu.iota {dimensions = array<i32: 1>} : vector<1x32xi32>
    %12 = vector.broadcast %11 : vector<1x32xi32> to vector<8x32xi32>
    %13 = vector.broadcast %1 : vector<8x1xi32> to vector<8x32xi32>
    %14 = arith.cmpi eq, %12, %13 : vector<8x32xi32>
    %cst = arith.constant dense<0xFF800000> : vector<8xf32>
    %15 = vector.multi_reduction <maximumf>, %0, %cst [1] : vector<8x32xf32> to vector<8xf32>
    %16 = vector.shape_cast %15 : vector<8xf32> to vector<8x1xf32>
    %17 = vector.broadcast %16 : vector<8x1xf32> to vector<8x32xf32>
    %18 = arith.subf %0, %17 : vector<8x32xf32>
    %19 = math.exp %18 : vector<8x32xf32>
    %cst_4 = arith.constant dense<0.000000e+00> : vector<8xf32>
    %20 = vector.multi_reduction <add>, %19, %cst_4 [1] : vector<8x32xf32> to vector<8xf32>
    %21 = vector.shape_cast %20 : vector<8xf32> to vector<8x1xf32>
    %c0_i32 = arith.constant 0 : i32
    %22 = arith.sitofp %c0_i32 : i32 to f32
    %23 = vector.broadcast %22 : f32 to vector<8x32xf32>
    %24 = arith.select %14, %0, %23 : vector<8x32xi1>, vector<8x32xf32>
    %cst_5 = arith.constant dense<0.000000e+00> : vector<8xf32>
    %25 = vector.multi_reduction <add>, %24, %cst_5 [1] : vector<8x32xf32> to vector<8xf32>
    %26 = vector.shape_cast %25 : vector<8xf32> to vector<8x1xf32>
    %27 = math.log %21 : vector<8x1xf32>
    %28 = arith.addf %27, %16 : vector<8x1xf32>
    %29 = arith.subf %28, %26 : vector<8x1xf32>
    %cst_6 = arith.constant 0.000000e+00 : f32
    %30 = vector.broadcast %cst_6 : f32 to vector<8x1xf32>
    %31 = arith.maximumf %29, %30 : vector<8x1xf32>
    %cst_7 = arith.constant 0.000000e+00 : f32
    %32 = vector.broadcast %cst_7 : f32 to vector<8x1xf32>
    %33 = arith.select %10, %31, %32 : vector<8x1xi1>, vector<8x1xf32>
    %cst_8 = arith.constant 0.000000e+00 : f32
    %34 = vector.broadcast %cst_8 : f32 to vector<8x1xf32>
    %35 = arith.subf %34, %33 : vector<8x1xf32>
    %36 = math.exp %35 : vector<8x1xf32>
    %cst_9 = arith.constant 1.000000e+00 : f32
    %37 = vector.broadcast %cst_9 : f32 to vector<8x1xf32>
    %38 = arith.subf %37, %36 : vector<8x1xf32>
    %cst_10 = arith.constant 0.000000e+00 : f32
    %39 = vector.broadcast %cst_10 : f32 to vector<8x1xf32>
    %40 = arith.maximumf %38, %39 : vector<8x1xf32>
    %41 = arith.mulf %40, %40 : vector<8x1xf32>
    %cst_11 = arith.constant 1.000000e+00 : f32
    %42 = vector.broadcast %cst_11 : f32 to vector<8x1xf32>
    %43 = arith.mulf %42, %41 : vector<8x1xf32>
    %44 = arith.mulf %43, %33 : vector<8x1xf32>
    %45 = vector.shape_cast %44 : vector<8x1xf32> to vector<1x8x1xf32>
    %cst_12 = arith.constant dense<0.000000e+00> : vector<1xf32>
    %46 = vector.multi_reduction <add>, %45, %cst_12 [1, 2] : vector<1x8x1xf32> to vector<1xf32>
    %47 = vector.shape_cast %46 : vector<1xf32> to vector<1x1x1xf32>
    %48 = vector.extract %47[0, 0, 0] : f32 from vector<1x1x1xf32>
    %49 = vector.broadcast %48 : f32 to vector<8x128xf32>
    %c0_13 = arith.constant 0 : index
    %c0_14 = arith.constant 0 : index
    %50 = vector.load %arg3[%c0_13, %c0_14] : memref<8x128xf32, #tpu.memory_space<vmem>>, vector<8x128xf32>
    tpu.vector_store %arg3[%c0_13, %c0_14], %49 {strides = array<i32>} : memref<8x128xf32, #tpu.memory_space<vmem>>, vector<8x128xf32>,
    return
  }
  func.func @transform_0(%arg0: i32) -> (i32, i32) {
    %c0_i32 = arith.constant 0 : i32
    %c0_i32_0 = arith.constant 0 : i32
    return %arg0, %c0_i32 : i32, i32
  }
  func.func @transform_1(%arg0: i32) -> (i32, i32) {
    %c0_i32 = arith.constant 0 : i32
    %c0_i32_0 = arith.constant 0 : i32
    return %arg0, %c0_i32 : i32, i32
  }
  func.func @transform_2(%arg0: i32) -> (i32, i32) {
    %c0_i32 = arith.constant 0 : i32
    %c0_i32_0 = arith.constant 0 : i32
    return %arg0, %c0_i32 : i32, i32
  }
}

</mosaic_0001>

<llo_original>
// kernel: tpu_custom_call.1
$region0: #{tpu_custom_call.1}
  #allocation0 [shape = 'u32[]', space=smem, size = 0x4, offset = 0x4, fixed_abs, tag = 'smem constant byte address 0x4 - core index']
  #allocation1 [shape = 'u32[72,128]{1,0:T(1,128)}', space=vmem, size = 0x9000, scoped, tag = 'internal scratch']
  %s0 = inlined_call_operand.vmem [shape: f32[8,32], index: 0, kind: input, shape index: {}]
  %s1 = inlined_call_operand.vmem [shape: s32[8,1], index: 1, kind: input, shape index: {}]
  %s2 = inlined_call_operand.hbm [shape: f32[8,128], index: 2, kind: output, shape index: {}]
  %s3 = sld [smem:[#allocation0]]
  $region18: #{tpu_custom_call.1} parent=0
    _
  %s5 = ssub.s32 1, %s3
  %s6 = scalar_select 0, %s5, %s3
  $region1: #{tpu_custom_call.1} parent=0
    #allocation2 [shape = 'u8[4096]{0}', space=vmem, size = 0x1000, scoped, tag = 'output window, operand 0, single buffered']
    #allocation3 [shape = 's32[1]{0}', space=sflag, size = 0x4, scoped, tag = 'scoped memory for tpu_custom_call.1']
    %7 = vsyncpa [#allocation3], 0
    // Predicated region
    $region2: #{tpu_custom_call.1} parent=1 // pred_check
      _
    $region3: #{tpu_custom_call.1} parent=1 // pred_check_branch
      %9 = sbr.rel (0) target = $region5
    $region4: #{tpu_custom_call.1} parent=1 // pred_region
      _
    $region5: #{tpu_custom_call.1} parent=1 // pred_fallthru
      _
    // Predicated region
    $region6: #{tpu_custom_call.1} parent=1 // pred_check
      _
    $region7: #{tpu_custom_call.1} parent=1 // pred_check_branch
      %11 = sbr.rel (0) target = $region9
    $region8: #{tpu_custom_call.1} parent=1 // pred_region
      _
    $region9: #{tpu_custom_call.1} parent=1 // pred_fallthru
      _
    %v12 = vld [vmem:[%s0] sm:$0xff]
    %v13 = vld [vmem:[%s1] sm:$0xff]
    %s14 = smul.u32 0, 8
    %v15 = vlaneseq
    %v16 = vshrl.u32 %v15, 7
    %v17 = vstv %s14
    %v18 = vadd.s32 %v17, %v16
    %vm19 = vcmp.lt.s32.totalorder %v18, 8
    %vm20 = vcmp.ne.s32.totalorder %v13, 4294967196
    %vm21 = vmand %vm19, %vm20
    %v22 = vlaneseq
    %v23 = vand.u32 %v22, 127
    %24 = vset.pattern.permute.xlu0 0
    %25 = vperm.xlu0 %24, %v13
    %v26 = vpop.permute.xlu0 %25
    %vm27 = vcmp.eq.s32.totalorder %v23, %v26
    %vm28 = vcmask 261120
    %v29 = vsel %vm28, %v12, -inf
    %30 = vmax.xlane.f32.xlu0 %v29
    %v31 = vpop.xlane.xlu0 %30
    %v32 = vsub.f32 %v12, %v31
    %v33 = vmul.f32 %v32, 1.442695
    %v34 = vpow.pop %v33
    %v35 = vsel %vm28, %v34, 0.0
    %36 = vadd.xlane.f32.xlu0 %v35
    %v37 = vpop.xlane.xlu0 %36
    %v38 = vsel %vm27, %v12, 0.0
    %v39 = vsel %vm28, %v38, 0.0
    %40 = vadd.xlane.f32.xlu0 %v39
    %v41 = vpop.xlane.xlu0 %40
    %v42 = vlog2.pop %v37
    %v43 = vmul.f32 %v42, 0.6931472
    %v44 = vadd.f32 %v43, %v31
    %v45 = vsub.f32 %v44, %v41
    %v46 = vmax.f32 %v45, 0.0
    %v47 = vsel %vm21, %v46, 0.0
    %v48 = vsub.f32 0.0, %v47
    %v49 = vmul.f32 %v48, 1.442695
    %v50 = vpow.pop %v49
    %v51 = vsub.f32 1.0, %v50
    %v52 = vmax.f32 %v51, 0.0
    %v53 = vmul.f32 %v52, %v52
    %v54 = vmul.f32 %v53, %v47
    %vm55 = vcmask 7168
    %v56 = vsel %vm55, %v54, 0.0
    %57 = vadd.xlane.f32.xlu0 %v56
    %v58 = vpop.xlane.xlu0 %57
    %v59 = vrot.slane %v58, 4
    %v60 = vadd.f32 %v58, %v59
    %v61 = vrot.slane %v60, 2
    %v62 = vadd.f32 %v60, %v61
    %v63 = vrot.slane %v62, 1
    %v64 = vadd.f32 %v62, %v63
    %s65 = vtos %v64
    %v66 = vstv %s65
    %67 = vst [vmem:[#allocation2] sm:$0xff] %v66
    // Predicated region
    $region10: #{tpu_custom_call.1} parent=1 // pred_check
      _
    $region11: #{tpu_custom_call.1} parent=1 // pred_check_branch
      %69 = sbr.rel (0) target = $region13
    $region12: #{tpu_custom_call.1} parent=1 // pred_region
      %71 = vsyncadd [#allocation3], 0
      %s73 = sshll.u32 [#allocation2], 4
      %s74 = int_to_ptr.vmem [resolvable:$true] %s73
      %s75 = sshll.u32 %s2, 4
      %s76 = int_to_ptr.hbm [resolvable:$true] %s75
      %78 = dma.vmem_to_hbm [thread:$0]  %s74, 128, %s76, [#allocation3]
    $region13: #{tpu_custom_call.1} parent=1 // pred_fallthru
      _
    // Predicated region
    $region14: #{tpu_custom_call.1} parent=1 // pred_check
      _
    $region15: #{tpu_custom_call.1} parent=1 // pred_check_branch
      %80 = sbr.rel (0) target = $region17
    $region16: #{tpu_custom_call.1} parent=1 // pred_region
      %82 = dma.done [#allocation3], 128
    $region17: #{tpu_custom_call.1} parent=1 // pred_fallthru
      _
    %83 = vsyncpa [#allocation3], 1

</llo_original>
